<compile_context>
chip_gen: v5e
topology: v5e:2x2
jax: 0.10.0
libtpu: 0.0.40
codegen_flags: <defaults>
</compile_context>

<pallas_src>
import jax
import jax.numpy as jnp
from jax.experimental import pallas as pl
from jax.experimental.pallas import tpu as pltpu


def _bases_drop_kernel(x_ref, m_ref, o_ref):
    # x_ref: (M, TF), m_ref: (1, TF).  Broadcast mask over the M (bases) axis.
    o_ref[...] = x_ref[...] * m_ref[...]


def _block_bytes(tf, M, itemsize):
    # x-in + mask-in + out tiles, each double-buffered by the Pallas pipeline.
    return 2 * (2 * M + 1) * tf * itemsize


def _choose_f_tile(F, M, itemsize, budget_bytes=8 * 1024 * 1024):
    """Largest chunk of the flattened (L*H*W) axis whose double-buffered
    working set fits a conservative VMEM budget (safe on v7x's 64 MiB)."""
    tf = F
    while (_block_bytes(tf, M, itemsize) > budget_bytes
           and tf % 2 == 0 and (tf // 2) % 128 == 0):
        tf //= 2
    return tf


def bases_drop(x, p, *, key=None, seed=0, training=True):
    """Pallas implementation of Bases_Drop.forward.

    x: (N, M, L, H, W) float array.
    """
    if not training or p <= 0.0:
        return x
    if p >= 1.0:
        # PyTorch-style dropout with p == 1 drops everything.
        return jnp.zeros_like(x)

    assert x.ndim == 5, "Bases_Drop expects a 5-D (N, M, L, H, W) input"
    N, M, L, H, W = x.shape
    F = L * H * W

    if key is None:
        key = jax.random.PRNGKey(seed)

    # One Bernoulli mask per (n, l, h, w), broadcast over M — same as PyTorch.
    scale = 1.0 / (1.0 - float(p))
    keep = jax.random.bernoulli(key, 1.0 - float(p), (N, 1, F))
    mask = (keep.astype(jnp.float32) * jnp.float32(scale)).astype(x.dtype)

    # Lane-dense flatten: last dim is L*H*W (a large multiple of 128 for
    # typical shapes), so the VPU / store path runs at full lane width.
    x_flat = x.reshape(N, M, F)

    tf = _choose_f_tile(F, M, x.dtype.itemsize)
    nf = F // tf
    grid = (N, nf)

    x_spec = pl.BlockSpec((None, M, tf), lambda n, f: (n, 0, f))
    m_spec = pl.BlockSpec((None, 1, tf), lambda n, f: (n, 0, f))

    cp_kwargs = dict(dimension_semantics=("parallel", "parallel"))
    need = _block_bytes(tf, M, x.dtype.itemsize)
    if need > 16 * 1024 * 1024:
        # Unsplittable large block (F not 128-divisible): raise scoped VMEM.
        cp_kwargs["vmem_limit_bytes"] = min(need + (4 << 20), 100 << 20)

    out = pl.pallas_call(
        _bases_drop_kernel,
        out_shape=jax.ShapeDtypeStruct((N, M, F), x.dtype),
        grid=grid,
        in_specs=[x_spec, m_spec],
        out_specs=x_spec,
        compiler_params=pltpu.CompilerParams(**cp_kwargs),
    )(x_flat, mask)

    return out.reshape(N, M, L, H, W)


if __name__ == "__main__":
    key = jax.random.PRNGKey(0)
    # Small shapes consistent with the 5-D (N, M, L, H, W) input the module asserts.
    N, M, L, H, W = 2, 4, 8, 16, 16
    p = 0.3

    kx, kmask = jax.random.split(key)
    x = jax.random.normal(kx, (N, M, L, H, W), dtype=jnp.float32)

    # Training mode: stochastic (but deterministically keyed) dropout.
    y = jax.block_until_ready(bases_drop(x, p, key=kmask, training=True))

    scale = 1.0 / (1.0 - p)

    # Sanity 1: each output element is either 0 or x / (1 - p).
    ratio = jnp.where(x != 0, y / x, 0.0)
    ok_vals = bool(
        jnp.all(jnp.isclose(ratio, 0.0, atol=1e-5)
                | jnp.isclose(ratio, scale, atol=1e-4)))

    # Sanity 2: the mask is identical across the M (bases) axis.
    kept = jnp.isclose(ratio, scale, atol=1e-4)
    ok_bcast = bool(jnp.all(kept == kept[:, :1]))

    # Sanity 3: exact match against a pure-JAX reference using the same key.
    keep_ref = jax.random.bernoulli(kmask, 1.0 - p, (N, 1, L * H * W))
    mask_ref = (keep_ref.astype(jnp.float32) * scale).reshape(N, 1, L, H, W)
    y_ref = x * mask_ref
    ok_ref = bool(jnp.allclose(y, y_ref, atol=1e-6))

    # Eval mode: identity.
    y_eval = jax.block_until_ready(bases_drop(x, p, key=kmask, training=False))
    ok_eval = bool(jnp.all(y_eval == x))

    # p >= 1 guard: all zeros.
    y_p1 = jax.block_until_ready(bases_drop(x, 1.0, key=kmask, training=True))
    ok_p1 = bool(jnp.all(y_p1 == 0))

    if ok_vals and ok_bcast and ok_ref and ok_eval and ok_p1:
        print("KERNEL_OK")
    else:
        raise SystemExit("mismatch in Bases_Drop kernel semantics")
</pallas_src>

<mosaic_0001>
module attributes {stable_mosaic.version = 11 : i64} {
  func.func @_bases_drop_kernel(%arg0: i32, %arg1: i32, %arg2: memref<1x4x2048xf32, #tpu.memory_space<vmem>>, %arg3: memref<1x1x2048xf32, #tpu.memory_space<vmem>>, %arg4: memref<1x4x2048xf32, #tpu.memory_space<vmem>>) attributes {dimension_semantics = [#tpu.dimension_semantics<parallel>, #tpu.dimension_semantics<parallel>], iteration_bounds = array<i64: 2, 1>, scalar_prefetch = 0 : i64, scratch_operands = 0 : i64, tpu.core_type = #tpu.core_type<tc>, window_params = [{transform_indices = @transform_0, window_bounds = array<i64: 1, 4, 2048>}, {transform_indices = @transform_1, window_bounds = array<i64: 1, 1, 2048>}, {transform_indices = @transform_2, window_bounds = array<i64: 1, 4, 2048>}]} {
    %c0 = arith.constant 0 : index
    %c0_0 = arith.constant 0 : index
    %c0_1 = arith.constant 0 : index
    %0 = vector.load %arg2[%c0, %c0_0, %c0_1] : memref<1x4x2048xf32, #tpu.memory_space<vmem>>, vector<1x4x2048xf32>
    %1 = vector.shape_cast %0 : vector<1x4x2048xf32> to vector<4x2048xf32>
    %c0_2 = arith.constant 0 : index
    %c0_3 = arith.constant 0 : index
    %c0_4 = arith.constant 0 : index
    %2 = vector.load %arg3[%c0_2, %c0_3, %c0_4] : memref<1x1x2048xf32, #tpu.memory_space<vmem>>, vector<1x1x2048xf32>
    %3 = vector.shape_cast %2 : vector<1x1x2048xf32> to vector<1x2048xf32>
    %4 = vector.broadcast %3 : vector<1x2048xf32> to vector<4x2048xf32>
    %5 = arith.mulf %1, %4 : vector<4x2048xf32>
    %c0_5 = arith.constant 0 : index
    %c0_6 = arith.constant 0 : index
    %c0_7 = arith.constant 0 : index
    %6 = vector.load %arg4[%c0_5, %c0_6, %c0_7] : memref<1x4x2048xf32, #tpu.memory_space<vmem>>, vector<1x4x2048xf32>
    %7 = vector.shape_cast %6 : vector<1x4x2048xf32> to vector<4x2048xf32>
    %8 = vector.shape_cast %5 : vector<4x2048xf32> to vector<1x4x2048xf32>
    tpu.vector_store %arg4[%c0_5, %c0_6, %c0_7], %8 {strides = array<i32>} : memref<1x4x2048xf32, #tpu.memory_space<vmem>>, vector<1x4x2048xf32>,
    return
  }
  func.func @transform_0(%arg0: i32, %arg1: i32) -> (i32, i32, i32) {
    %c0_i32 = arith.constant 0 : i32
    %c0_i32_0 = arith.constant 0 : i32
    return %arg0, %c0_i32, %arg1 : i32, i32, i32
  }
  func.func @transform_1(%arg0: i32, %arg1: i32) -> (i32, i32, i32) {
    %c0_i32 = arith.constant 0 : i32
    %c0_i32_0 = arith.constant 0 : i32
    return %arg0, %c0_i32, %arg1 : i32, i32, i32
  }
  func.func @transform_2(%arg0: i32, %arg1: i32) -> (i32, i32, i32) {
    %c0_i32 = arith.constant 0 : i32
    %c0_i32_0 = arith.constant 0 : i32
    return %arg0, %c0_i32, %arg1 : i32, i32, i32
  }
}

</mosaic_0001>

<llo_original>
// kernel: tpu_custom_call.1
$region0: #{tpu_custom_call.1}
  #allocation0 [shape = 'u32[]', space=smem, size = 0x4, offset = 0x4, fixed_abs, tag = 'smem constant byte address 0x4 - core index']
  #allocation1 [shape = 'u32[72,128]{1,0:T(1,128)}', space=vmem, size = 0x9000, scoped, tag = 'internal scratch']
  %s0 = inlined_call_operand.hbm [shape: f32[2,4,2048], index: 0, kind: input, shape index: {}]
  %s1 = inlined_call_operand.hbm [shape: f32[2,1,2048], index: 1, kind: input, shape index: {}]
  %s2 = inlined_call_operand.hbm [shape: f32[2,4,2048], index: 2, kind: output, shape index: {}]
  %s3 = sld [smem:[#allocation0]]
  $region49: #{tpu_custom_call.1} parent=0
    _
  %s5 = ssub.s32 1, %s3
  %s6 = scalar_select 0, %s5, %s3
  $region1: #{tpu_custom_call.1} parent=0
    #allocation2 [shape = 'u8[65536]{0}', space=vmem, size = 0x10000, scoped, tag = 'input window, operand 0']
    #allocation3 [shape = 's32[2]{0}', space=sflag, size = 0x8, scoped, tag = 'scoped memory for tpu_custom_call.1']
    #allocation4 [shape = 's32[2]{0}', space=sflag, size = 0x8, scoped, tag = 'scoped memory for tpu_custom_call.1']
    #allocation5 [shape = 'u8[16384]{0}', space=vmem, size = 0x4000, scoped, tag = 'input window, operand 1']
    #allocation6 [shape = 's32[2]{0}', space=sflag, size = 0x8, scoped, tag = 'scoped memory for tpu_custom_call.1']
    #allocation7 [shape = 'u8[65536]{0}', space=vmem, size = 0x10000, scoped, tag = 'output window, operand 0']
    %7 = vsyncpa [#allocation3], 0
    %s8 = scalar_lea.sflag [#allocation3], 1
    %9 = vsyncpa %s8, 0
    %10 = vsyncpa [#allocation6], 0
    %s11 = scalar_lea.sflag [#allocation6], 1
    %12 = vsyncpa %s11, 0
    %13 = vsyncpa [#allocation4], 0
    %s14 = scalar_lea.sflag [#allocation4], 1
    %15 = vsyncpa %s14, 0
    loop: start=0, step=1, limit=4
    $region2: #{tpu_custom_call.1} parent=1 // loop_pre_header
      _
    $region3: #{tpu_custom_call.1} parent=1 // loop_header
      %s17 = sphi 0, %s21
      %p18 = scmp.ge.s32.totalorder %s17, 4
      %s24 = sphi 0, %s36
      %s25 = sphi 0, %s32
      %s26 = sphi 0, %s24
      %s27 = sphi 0, %s25
      %s28 = sphi 0, %s26
      %s29 = sphi 0, %s27
      %s41 = sphi 0, %s43
      %s44 = sphi 0, %s41
      %s45 = sphi 0, %s44
      %s61 = sphi 0, %s45
      %s69 = sphi 0, %s71
      %s72 = sphi 0, %s69
      %s73 = sphi 0, %s72
      %s89 = sphi 0, %s73
      %s97 = sphi 0, %s99
      %s100 = sphi 0, %s97
      %s101 = sphi 0, %s100
      %s117 = sphi 0, %s101
    $region4: #{tpu_custom_call.1} parent=1 // loop_header_branch
      %20 = sbr.rel (%p18) target = $region8
    $region5: #{tpu_custom_call.1} parent=1 // loop_body
      %s22 = ssub.s32 %s17, 1
      %s23 = ssub.s32 %s17, 2
      %s30 = sadd.s32 1, %s25
      %p31 = scmp.ge.s32.totalorder %s30, 1
      %s32 = scalar_select %p31, 0, %s30
      %s33 = sadd.s32 1, %s24
      %s34 = scalar_select %p31, %s33, %s24
      %p35 = scmp.ge.s32.totalorder %s34, 2
      %s36 = scalar_select %p35, 0, %s34
      %s37 = ssub.s32 %s24, %s36
      %s38 = ssub.s32 %s25, %s32
      %s39 = sor.u32 %s37, %s38
      %p40 = scmp.eq.s32.totalorder %s39, 0
      %s42 = sadd.s32 %s41, 1
      %s43 = scalar_select %p40, %s41, %s42
      %p46 = pneg %p40
      %p47 = scmp.eq.s32.totalorder %s17, 1
      %p48 = por %p46, %p47
      %p49 = scmp.ne.s32.totalorder %s41, %s44
      %p50 = scmp.eq.s32.totalorder %s17, 0
      %p51 = por %p49, %p50
      %p52 = scmp.ne.s32.totalorder %s41, %s44
      %p53 = scmp.eq.s32.totalorder %s22, 1
      %p54 = por %p52, %p53
      %p55 = scmp.ne.s32.totalorder %s44, %s45
      %p56 = scmp.eq.s32.totalorder %s22, 0
      %p57 = por %p55, %p56
      %p58 = scmp.ne.s32.totalorder %s44, %s45
      %p59 = scmp.eq.s32.totalorder %s23, 1
      %p60 = por %p58, %p59
      %p62 = scmp.ne.s32.totalorder %s45, %s61
      %p63 = scmp.eq.s32.totalorder %s23, 0
      %p64 = por %p62, %p63
      %s65 = ssub.s32 %s24, %s36
      %s66 = ssub.s32 %s25, %s32
      %s67 = sor.u32 %s65, %s66
      %p68 = scmp.eq.s32.totalorder %s67, 0
      %s70 = sadd.s32 %s69, 1
      %s71 = scalar_select %p68, %s69, %s70
      %p74 = pneg %p68
      %p75 = scmp.eq.s32.totalorder %s17, 1
      %p76 = por %p74, %p75
      %p77 = scmp.ne.s32.totalorder %s69, %s72
      %p78 = scmp.eq.s32.totalorder %s17, 0
      %p79 = por %p77, %p78
      %p80 = scmp.ne.s32.totalorder %s69, %s72
      %p81 = scmp.eq.s32.totalorder %s22, 1
      %p82 = por %p80, %p81
      %p83 = scmp.ne.s32.totalorder %s72, %s73
      %p84 = scmp.eq.s32.totalorder %s22, 0
      %p85 = por %p83, %p84
      %p86 = scmp.ne.s32.totalorder %s72, %s73
      %p87 = scmp.eq.s32.totalorder %s23, 1
      %p88 = por %p86, %p87
      %p90 = scmp.ne.s32.totalorder %s73, %s89
      %p91 = scmp.eq.s32.totalorder %s23, 0
      %p92 = por %p90, %p91
      %s93 = ssub.s32 %s24, %s36
      %s94 = ssub.s32 %s25, %s32
      %s95 = sor.u32 %s93, %s94
      %p96 = scmp.eq.s32.totalorder %s95, 0
      %s98 = sadd.s32 %s97, 1
      %s99 = scalar_select %p96, %s97, %s98
      %p102 = pneg %p96
      %p103 = scmp.eq.s32.totalorder %s17, 1
      %p104 = por %p102, %p103
      %p105 = scmp.ne.s32.totalorder %s97, %s100
      %p106 = scmp.eq.s32.totalorder %s17, 0
      %p107 = por %p105, %p106
      %p108 = scmp.ne.s32.totalorder %s97, %s100
      %p109 = scmp.eq.s32.totalorder %s22, 1
      %p110 = por %p108, %p109
      %p111 = scmp.ne.s32.totalorder %s100, %s101
      %p112 = scmp.eq.s32.totalorder %s22, 0
      %p113 = por %p111, %p112
      %p114 = scmp.ne.s32.totalorder %s100, %s101
      %p115 = scmp.eq.s32.totalorder %s23, 1
      %p116 = por %p114, %p115
      %p118 = scmp.ne.s32.totalorder %s101, %s117
      %p119 = scmp.eq.s32.totalorder %s23, 0
      %p120 = por %p118, %p119
      %p121 = scmp.le.s32.totalorder 1, %s17
      %p122 = scmp.lt.s32.totalorder %s17, 3
      %p123 = pnand %p121, %p122
      %p124 = pneg %p123
      // Predicated region
      $region9: #{tpu_custom_call.1} parent=5 // pred_check
        _
      $region10: #{tpu_custom_call.1} parent=5 // pred_check_branch
        %126 = sbr.rel (%p123) target = $region12
      $region11: #{tpu_custom_call.1} parent=5 // pred_region
        %s127 = ssub.s32 %s17, 1
      $region12: #{tpu_custom_call.1} parent=5 // pred_fallthru
        _
      %p128 = scmp.lt.s32.totalorder %s17, 2
      // Predicated region
      $region13: #{tpu_custom_call.1} parent=5 // pred_check
        %p129 = pneg %p128
      $region14: #{tpu_custom_call.1} parent=5 // pred_check_branch
        %131 = sbr.rel (%p129) target = $region16
      $region15: #{tpu_custom_call.1} parent=5 // pred_region
        // Predicated region
        $region17: #{tpu_custom_call.1} parent=15 // pred_check
          %p132 = pneg %p51
        $region18: #{tpu_custom_call.1} parent=15 // pred_check_branch
          %134 = sbr.rel (%p132) target = $region20
        $region19: #{tpu_custom_call.1} parent=15 // pred_region
          %s135 = sand.u32 %s41, 1
          %s136 = scalar_lea.sflag [#allocation3], %s135
          %s137 = sand.u32 %s41, 1
          %s138 = smul.addr %s137, 64
          %s139 = scalar_lea.vmem [#allocation2], %s138
          %s140 = smul.u32 16, %s25
          %142 = vsyncadd %s136, 0
          %s143 = smul.addr %s24, 16
          %s144 = sadd.s32 %s140, %s143
          %s145 = smul.addr %s144, 4
          %s146 = scalar_lea.hbm %s0, %s145
          %s148 = sshll.u32 %s146, 4
          %s149 = int_to_ptr.hbm [resolvable:$true] %s148
          %s150 = sshll.u32 %s139, 4
          %s151 = int_to_ptr.vmem [resolvable:$true] %s150
          %153 = dma.hbm_to_vmem [thread:$0]  %s149, 1024, %s151, %s136
        $region20: #{tpu_custom_call.1} parent=15 // pred_fallthru
          _
        // Predicated region
        $region21: #{tpu_custom_call.1} parent=15 // pred_check
          %p154 = pneg %p79
        $region22: #{tpu_custom_call.1} parent=15 // pred_check_branch
          %156 = sbr.rel (%p154) target = $region24
        $region23: #{tpu_custom_call.1} parent=15 // pred_region
          %s157 = sand.u32 %s69, 1
          %s158 = scalar_lea.sflag [#allocation6], %s157
          %s159 = sand.u32 %s69, 1
          %s160 = smul.addr %s159, 16
          %s161 = scalar_lea.vmem [#allocation5], %s160
          %s162 = smul.u32 16, %s25
          %164 = vsyncadd %s158, 0
          %s165 = smul.addr %s24, 16
          %s166 = sadd.s32 %s162, %s165
          %s167 = scalar_lea.hbm %s1, %s166
          %s169 = sshll.u32 %s167, 4
          %s170 = int_to_ptr.hbm [resolvable:$true] %s169
          %s171 = sshll.u32 %s161, 4
          %s172 = int_to_ptr.vmem [resolvable:$true] %s171
          %174 = dma.hbm_to_vmem [thread:$0]  %s170, 256, %s172, %s158
        $region24: #{tpu_custom_call.1} parent=15 // pred_fallthru
          _
      $region16: #{tpu_custom_call.1} parent=5 // pred_fallthru
        _
      %p175 = scmp.le.s32.totalorder 1, %s17
      %p176 = scmp.lt.s32.totalorder %s17, 3
      %p177 = pnand %p175, %p176
      %p178 = pneg %p177
      // Predicated region
      $region25: #{tpu_custom_call.1} parent=5 // pred_check
        _
      $region26: #{tpu_custom_call.1} parent=5 // pred_check_branch
        %180 = sbr.rel (%p177) target = $region28
      $region27: #{tpu_custom_call.1} parent=5 // pred_region
        %s181 = ssub.s32 %s17, 1
        %s182 = sand.u32 %s44, 1
        %s183 = scalar_lea.sflag [#allocation3], %s182
        %s184 = sand.u32 %s44, 1
        %s185 = smul.addr %s184, 64
        %s186 = scalar_lea.vmem [#allocation2], %s185
        // Predicated region
        $region29: #{tpu_custom_call.1} parent=27 // pred_check
          %p187 = pneg %p57
        $region30: #{tpu_custom_call.1} parent=27 // pred_check_branch
          %189 = sbr.rel (%p187) target = $region32
        $region31: #{tpu_custom_call.1} parent=27 // pred_region
          %191 = dma.done %s183, 1024
        $region32: #{tpu_custom_call.1} parent=27 // pred_fallthru
          _
        %s192 = sand.u32 %s72, 1
        %s193 = scalar_lea.sflag [#allocation6], %s192
        %s194 = sand.u32 %s72, 1
        %s195 = smul.addr %s194, 16
        %s196 = scalar_lea.vmem [#allocation5], %s195
        // Predicated region
        $region33: #{tpu_custom_call.1} parent=27 // pred_check
          %p197 = pneg %p85
        $region34: #{tpu_custom_call.1} parent=27 // pred_check_branch
          %199 = sbr.rel (%p197) target = $region36
        $region35: #{tpu_custom_call.1} parent=27 // pred_region
          %201 = dma.done %s193, 256
        $region36: #{tpu_custom_call.1} parent=27 // pred_fallthru
          _
        %s202 = sand.u32 %s44, 1
        %s203 = scalar_lea.sflag [#allocation3], %s202
        %s204 = sand.u32 %s44, 1
        %s205 = smul.addr %s204, 64
        %s206 = scalar_lea.vmem [#allocation2], %s205
        %p207 = pneg %p57
        %p208 = pneg %p54
        %s209 = sand.u32 %s72, 1
        %s210 = scalar_lea.sflag [#allocation6], %s209
        %s211 = sand.u32 %s72, 1
        %s212 = smul.addr %s211, 16
        %s213 = scalar_lea.vmem [#allocation5], %s212
        %p214 = pneg %p85
        %p215 = pneg %p82
        %p216 = pneg %p113
        %p217 = pneg %p110
        %s218 = sand.u32 %s100, 1
        %s219 = scalar_lea.sflag [#allocation4], %s218
        %s220 = sand.u32 %s100, 1
        %s221 = smul.addr %s220, 64
        %s222 = scalar_lea.vmem [#allocation7], %s221
        %s223 = smul.u32 16, %s27
        %s224 = smul.u32 16, %s27
        %s225 = smul.u32 16, %s27
        %v226 = vld [vmem:[%s186] sm:$0xff]
        %v227 = vld [vmem:[%s186 + $0x8] sm:$0xff]
        %v228 = vld [vmem:[%s186 + $0x10] sm:$0xff]
        %v229 = vld [vmem:[%s186 + $0x18] sm:$0xff]
        %v230 = vld [vmem:[%s186 + $0x20] sm:$0xff]
        %v231 = vld [vmem:[%s186 + $0x28] sm:$0xff]
        %v232 = vld [vmem:[%s186 + $0x30] sm:$0xff]
        %v233 = vld [vmem:[%s186 + $0x38] sm:$0xff]
        %v234 = vld [vmem:[%s196] sm:$0xff]
        %v235 = vld [vmem:[%s196 + $0x8] sm:$0xff]
        %v238 = vperm.slane %v234, 0
        %v239 = vperm.slane %v234, 1
        %v240 = vperm.slane %v234, 2
        %v241 = vperm.slane %v234, 3
        %v242 = vperm.slane %v234, 4
        %v243 = vperm.slane %v234, 5
        %v244 = vperm.slane %v234, 6
        %v245 = vperm.slane %v234, 7
        %v246 = vperm.slane %v235, 0
        %v247 = vperm.slane %v235, 1
        %v248 = vperm.slane %v235, 2
        %v249 = vperm.slane %v235, 3
        %v250 = vperm.slane %v235, 4
        %v251 = vperm.slane %v235, 5
        %v252 = vperm.slane %v235, 6
        %v253 = vperm.slane %v235, 7
        %v254 = vrot.slane %v239, 4
        %v255 = vrot.slane %v241, 4
        %v256 = vrot.slane %v243, 4
        %v257 = vrot.slane %v245, 4
        %v258 = vrot.slane %v247, 4
        %v259 = vrot.slane %v249, 4
        %v260 = vrot.slane %v251, 4
        %v261 = vrot.slane %v253, 4
        %vm262 = vcmask 1043456
        %v263 = vsel %vm262, %v238, %v254
        %v264 = vsel %vm262, %v240, %v255
        %v265 = vsel %vm262, %v242, %v256
        %v266 = vsel %vm262, %v244, %v257
        %v267 = vsel %vm262, %v246, %v258
        %v268 = vsel %vm262, %v248, %v259
        %v269 = vsel %vm262, %v250, %v260
        %v270 = vsel %vm262, %v252, %v261
        %v279 = vmul.f32 %v226, %v263
        %v280 = vmul.f32 %v227, %v264
        %v281 = vmul.f32 %v228, %v265
        %v282 = vmul.f32 %v229, %v266
        %v283 = vmul.f32 %v230, %v267
        %v284 = vmul.f32 %v231, %v268
        %v285 = vmul.f32 %v232, %v269
        %v286 = vmul.f32 %v233, %v270
        %287 = vst [vmem:[%s222] sm:$0xff] %v279
        %288 = vst [vmem:[%s222 + $0x8] sm:$0xff] %v280
        %289 = vst [vmem:[%s222 + $0x10] sm:$0xff] %v281
        %290 = vst [vmem:[%s222 + $0x18] sm:$0xff] %v282
        %291 = vst [vmem:[%s222 + $0x20] sm:$0xff] %v283
        %292 = vst [vmem:[%s222 + $0x28] sm:$0xff] %v284
        %293 = vst [vmem:[%s222 + $0x30] sm:$0xff] %v285
        %294 = vst [vmem:[%s222 + $0x38] sm:$0xff] %v286
        %s295 = sand.u32 %s100, 1
        %s296 = scalar_lea.sflag [#allocation4], %s295
        %s297 = sand.u32 %s100, 1
        %s298 = smul.addr %s297, 64
        %s299 = scalar_lea.vmem [#allocation7], %s298
        // Predicated region
        $region37: #{tpu_custom_call.1} parent=27 // pred_check
          %p300 = pneg %p110
        $region38: #{tpu_custom_call.1} parent=27 // pred_check_branch
          %302 = sbr.rel (%p300) target = $region40
        $region39: #{tpu_custom_call.1} parent=27 // pred_region
          %s303 = smul.u32 16, %s27
          %305 = vsyncadd %s296, 0
          %s306 = smul.addr %s26, 16
          %s307 = sadd.s32 %s303, %s306
          %s308 = smul.addr %s307, 4
          %s309 = scalar_lea.hbm %s2, %s308
          %s311 = sshll.u32 %s299, 4
          %s312 = int_to_ptr.vmem [resolvable:$true] %s311
          %s313 = sshll.u32 %s309, 4
          %s314 = int_to_ptr.hbm [resolvable:$true] %s313
          %316 = dma.vmem_to_hbm [thread:$0]  %s312, 1024, %s314, %s296
        $region40: #{tpu_custom_call.1} parent=27 // pred_fallthru
          _
      $region28: #{tpu_custom_call.1} parent=5 // pred_fallthru
        _
      %p317 = scmp.le.s32.totalorder 2, %s17
      // Predicated region
      $region41: #{tpu_custom_call.1} parent=5 // pred_check
        %p318 = pneg %p317
      $region42: #{tpu_custom_call.1} parent=5 // pred_check_branch
        %320 = sbr.rel (%p318) target = $region44
      $region43: #{tpu_custom_call.1} parent=5 // pred_region
        %s321 = ssub.s32 %s17, 2
        // Predicated region
        $region45: #{tpu_custom_call.1} parent=43 // pred_check
          %p322 = pneg %p116
        $region46: #{tpu_custom_call.1} parent=43 // pred_check_branch
          %324 = sbr.rel (%p322) target = $region48
        $region47: #{tpu_custom_call.1} parent=43 // pred_region
          %s325 = sand.u32 %s101, 1
          %s326 = scalar_lea.sflag [#allocation4], %s325
          %s327 = sand.u32 %s101, 1
          %s328 = smul.addr %s327, 64
          %s329 = scalar_lea.vmem [#allocation7], %s328
          %331 = dma.done %s326, 1024
        $region48: #{tpu_custom_call.1} parent=43 // pred_fallthru
          _
      $region44: #{tpu_custom_call.1} parent=5 // pred_fallthru
        _
    $region6: #{tpu_custom_call.1} parent=1 // loop_footer
      %s21 = sadd.s32 1, %s17
    $region7: #{tpu_custom_call.1} parent=1 // loop_footer_branch
      %16 = sbr.rel target = $region3
    $region8: #{tpu_custom_call.1} parent=1 // loop_exit
      _
    %332 = vsyncpa [#allocation3], 1
    %s333 = scalar_lea.sflag [#allocation3], 1
    %334 = vsyncpa %s333, 1
    %335 = vsyncpa [#allocation6], 1
    %s336 = scalar_lea.sflag [#allocation6], 1
    %337 = vsyncpa %s336, 1
    %338 = vsyncpa [#allocation4], 1
    %s339 = scalar_lea.sflag [#allocation4], 1
    %340 = vsyncpa %s339, 1

</llo_original>
